<compile_context>
chip_gen: v5e
topology: v5e:2x2
jax: 0.10.0
libtpu: 0.0.40
codegen_flags: <defaults>
</compile_context>

<pallas_src>
import functools

import numpy as np
import jax
import jax.numpy as jnp
from jax.experimental import pallas as pl
from jax.experimental.pallas import tpu as pltpu


def _round_up(x: int, m: int) -> int:
    return ((x + m - 1) // m) * m


def _cat_logreg_kernel(num_ref, idx_ref, w_ref, bias_ref, catp_ref, out_ref,
                       *, n_cat: int, use_multihot: bool, matmul_dtype):
    # num_ref:  (TB, N)  f32           batch tile of numeric features
    # idx_ref:  (TB, C)  i32           precomputed global embedding-row indices
    # w_ref:    (N, O)   matmul_dtype  transposed linear weight (grid-resident)
    # bias_ref: (1, O)   f32           bias (grid-resident)
    # catp_ref: (T, O)   f32           embedding table (grid-resident)
    # out_ref:  (TB, O)  out dtype
    x = bias_ref[...] + jnp.dot(
        num_ref[...].astype(matmul_dtype), w_ref[...],
        preferred_element_type=jnp.float32,
    )

    if n_cat > 0:
        table = catp_ref[...]                 # (T, O)
        idx = idx_ref[...]                    # (TB, C)
        if use_multihot:
            # Small table: ONE MXU matmul against a multi-hot (TB, T) matrix built on
            # the VPU, instead of a serial chain of gathers on the XLU/load path.
            tb, t = idx.shape[0], table.shape[0]
            lane_iota = jax.lax.broadcasted_iota(jnp.int32, (tb, t), 1)
            mh = jnp.zeros((tb, t), jnp.float32)
            for c in range(n_cat):            # n_cat is a small static constant
                mh = mh + (idx[:, c:c + 1] == lane_iota).astype(jnp.float32)
            x = x + jnp.dot(mh, table, preferred_element_type=jnp.float32)
        else:
            # Larger table: real row gathers, accumulated separately from x to keep
            # the adds off the matmul's dependency chain.
            # NOTE: mode="clip" silently clamps out-of-range category indices
            # (PyTorch would raise); it also guards garbage rows of a ragged tile.
            cat_acc = jnp.zeros_like(x)
            for c in range(n_cat):
                cat_acc = cat_acc + jnp.take(table, idx[:, c], axis=0, mode="clip")
            x = x + cat_acc

    x = jnp.clip(x, -50.0, 50.0)
    out_ref[...] = jax.nn.sigmoid(x).astype(out_ref.dtype)


def cat_logistic_regression_forward(numbers, categories, weight, bias, cat_params,
                                     embed_idx, *, block_b: int = 1024,
                                     use_bf16_matmul: bool = False,
                                     multihot_table_rows: int = 1024,
                                     out_dtype=jnp.float32):
    """numbers: (B, N) f32; categories: (B, C) int; weight: (O, N) f32 (torch layout);
    bias: (O,) f32; cat_params: (T, O) f32; embed_idx: (C,) int (cumulative offsets).

    use_bf16_matmul=True is recommended on v5e (bf16-native MXU); loosen any exact
    comparison tolerances accordingly (accumulation stays f32)."""
    numbers = numbers.astype(jnp.float32)
    B, N = numbers.shape
    _, C = categories.shape
    T, O = cat_params.shape

    SUBLANE = 8
    # Batch tile: as large as affordable, but keep >=2 grid steps when B allows so
    # v7x's two TensorCores can split the "parallel" batch axis.
    TB = min(block_b, _round_up(B, SUBLANE))
    if B > 2 * SUBLANE and pl.cdiv(B, TB) < 2:
        TB = _round_up(pl.cdiv(B, 2), SUBLANE)
    grid_b = pl.cdiv(B, TB)        # ragged last tile -> masked output stores

    matmul_dtype = jnp.bfloat16 if use_bf16_matmul else jnp.float32
    use_multihot = T <= multihot_table_rows

    # Fold embed_idx into the category indices once (tiny (B, C) elementwise op).
    idx = categories.astype(jnp.int32) + embed_idx.astype(jnp.int32)[None, :]
    # Grid-invariant params: pre-cast / pre-transpose once in the wrapper (no
    # per-tile VPU casts in the kernel, smaller resident VMEM when bf16).
    weight_t = weight.astype(matmul_dtype).T           # (N, O)
    bias2 = bias.astype(jnp.float32).reshape(1, O)     # (1, O)
    catp = cat_params.astype(jnp.float32)              # (T, O)

    # Explicit scoped-VMEM budget: resident params + double-buffered batch tiles +
    # headroom, using in-VMEM (8, 128) padded footprints; clamped to a range that is
    # safe on v5e/v6e (128 MiB physical) and v7x (64 MiB physical).
    def vmem_bytes(r, c, itemsize):
        return _round_up(max(r, 1), 8) * _round_up(max(c, 1), 128) * itemsize

    out_item = np.dtype(out_dtype).itemsize
    w_item = 2 if use_bf16_matmul else 4
    est = 2 * (vmem_bytes(TB, N, 4) + vmem_bytes(TB, C, 4) + vmem_bytes(TB, O, out_item))
    est += 2 * (vmem_bytes(N, O, w_item) + vmem_bytes(1, O, 4) + vmem_bytes(T, O, 4))
    if use_multihot:
        est += 2 * vmem_bytes(TB, T, 4)    # multi-hot intermediate
    est += 4 << 20                         # headroom
    vmem_limit = int(min(max(est, 32 << 20), 48 << 20))

    kernel = functools.partial(_cat_logreg_kernel, n_cat=C,
                               use_multihot=use_multihot, matmul_dtype=matmul_dtype)

    return pl.pallas_call(
        kernel,
        out_shape=jax.ShapeDtypeStruct((B, O), out_dtype),
        grid=(grid_b,),
        in_specs=[
            pl.BlockSpec((TB, N), lambda i: (i, 0)),   # batch-tiled numerics
            pl.BlockSpec((TB, C), lambda i: (i, 0)),   # batch-tiled indices
            pl.BlockSpec((N, O), lambda i: (0, 0)),    # resident weight (pre-cast)
            pl.BlockSpec((1, O), lambda i: (0, 0)),    # resident bias
            pl.BlockSpec((T, O), lambda i: (0, 0)),    # resident embedding table
        ],
        out_specs=pl.BlockSpec((TB, O), lambda i: (i, 0)),
        compiler_params=pltpu.CompilerParams(
            dimension_semantics=("parallel",),         # v7x: split batch across TCs
            vmem_limit_bytes=vmem_limit,
        ),
    )(numbers, idx, weight_t, bias2, catp)


if __name__ == "__main__":
    key = jax.random.PRNGKey(0)

    # Small shapes implied by the module.
    B = 8                        # batch
    numeric_size = 16
    embed_sizes = jnp.array([4, 5, 3], dtype=jnp.int32)   # 3 categorical features
    C = int(embed_sizes.shape[0])
    T = int(embed_sizes.sum())                            # total embedding rows
    output_size = 2

    k1, k2, k3, k4, k5 = jax.random.split(key, 5)
    numbers = jax.random.normal(k1, (B, numeric_size), dtype=jnp.float32)
    cat_cols = []
    for j in range(C):
        kj = jax.random.fold_in(k2, j)
        cat_cols.append(jax.random.randint(kj, (B,), 0, int(embed_sizes[j]), dtype=jnp.int32))
    categories = jnp.stack(cat_cols, axis=1)              # (B, C)

    # Deterministic synthetic parameters (module inits to zeros; use small random
    # values from PRNGKey(0) for a non-trivial correctness check).
    weight = jax.random.normal(k3, (output_size, numeric_size), dtype=jnp.float32) * 0.1
    bias = jax.random.normal(k4, (output_size,), dtype=jnp.float32) * 0.1
    cat_params = jax.random.normal(k5, (T, output_size), dtype=jnp.float32) * 0.1
    embed_idx = jnp.cumsum(embed_sizes) - embed_sizes      # (C,) offsets

    out = cat_logistic_regression_forward(numbers, categories, weight, bias,
                                          cat_params, embed_idx)
    out = jax.block_until_ready(out)

    # Pure-JAX reference.
    ref = bias[None, :] + numbers @ weight.T
    ref = ref + cat_params[categories + embed_idx[None, :]].sum(axis=1)
    ref = jax.nn.sigmoid(jnp.clip(ref, -50.0, 50.0))

    assert out.shape == (B, output_size)
    assert jnp.allclose(out, ref, atol=1e-5, rtol=1e-5), (out, ref)
    print("KERNEL_OK")
</pallas_src>

<mosaic_0001>
module attributes {stable_mosaic.version = 11 : i64} {
  func.func @_cat_logreg_kernel(%arg0: i32, %arg1: memref<8x16xf32, #tpu.memory_space<vmem>>, %arg2: memref<8x3xi32, #tpu.memory_space<vmem>>, %arg3: memref<16x2xf32, #tpu.memory_space<vmem>>, %arg4: memref<1x2xf32, #tpu.memory_space<vmem>>, %arg5: memref<12x2xf32, #tpu.memory_space<vmem>>, %arg6: memref<8x2xf32, #tpu.memory_space<vmem>>) attributes {dimension_semantics = [#tpu.dimension_semantics<parallel>], iteration_bounds = array<i64: 1>, scalar_prefetch = 0 : i64, scratch_operands = 0 : i64, tpu.core_type = #tpu.core_type<tc>, window_params = [{transform_indices = @transform_0, window_bounds = array<i64: 8, 16>}, {transform_indices = @transform_1, window_bounds = array<i64: 8, 3>}, {pipeline_mode = #tpu.pipeline_mode<synchronous>, transform_indices = @transform_2, window_bounds = array<i64: 16, 2>}, {pipeline_mode = #tpu.pipeline_mode<synchronous>, transform_indices = @transform_3, window_bounds = array<i64: 1, 2>}, {pipeline_mode = #tpu.pipeline_mode<synchronous>, transform_indices = @transform_4, window_bounds = array<i64: 12, 2>}, {transform_indices = @transform_5, window_bounds = array<i64: 8, 2>}]} {
    %c0 = arith.constant 0 : index
    %c0_0 = arith.constant 0 : index
    %0 = vector.load %arg4[%c0, %c0_0] : memref<1x2xf32, #tpu.memory_space<vmem>>, vector<1x2xf32>
    %c0_1 = arith.constant 0 : index
    %c0_2 = arith.constant 0 : index
    %1 = vector.load %arg1[%c0_1, %c0_2] : memref<8x16xf32, #tpu.memory_space<vmem>>, vector<8x16xf32>
    %c0_3 = arith.constant 0 : index
    %c0_4 = arith.constant 0 : index
    %2 = vector.load %arg3[%c0_3, %c0_4] : memref<16x2xf32, #tpu.memory_space<vmem>>, vector<16x2xf32>
    %cst = arith.constant dense<0.000000e+00> : vector<8x2xf32>
    %3 = tpu.matmul %1, %2, %cst {dimension_numbers = #tpu.dot_dimension_numbers<[1], [0], [0], [1], [0, 0, 1, 1], [], []>} : vector<8x16xf32>, vector<16x2xf32>, vector<8x2xf32> -> vector<8x2xf32>
    %4 = vector.broadcast %0 : vector<1x2xf32> to vector<8x2xf32>
    %5 = arith.addf %4, %3 : vector<8x2xf32>
    %c0_5 = arith.constant 0 : index
    %c0_6 = arith.constant 0 : index
    %6 = vector.load %arg5[%c0_5, %c0_6] : memref<12x2xf32, #tpu.memory_space<vmem>>, vector<12x2xf32>
    %c0_7 = arith.constant 0 : index
    %c0_8 = arith.constant 0 : index
    %7 = vector.load %arg2[%c0_7, %c0_8] : memref<8x3xi32, #tpu.memory_space<vmem>>, vector<8x3xi32>
    %8 = tpu.iota {dimensions = array<i32: 1>} : vector<8x12xi32>
    %cst_9 = arith.constant 0.000000e+00 : f32
    %9 = vector.broadcast %cst_9 : f32 to vector<8x12xf32>
    %10 = vector.extract_strided_slice %7 {offsets = [0, 0], sizes = [8, 1], strides = [1, 1]} : vector<8x3xi32> to vector<8x1xi32>
    %11 = vector.broadcast %10 : vector<8x1xi32> to vector<8x12xi32>
    %12 = arith.cmpi eq, %11, %8 : vector<8x12xi32>
    %13 = arith.extui %12 : vector<8x12xi1> to vector<8x12xi32>
    %14 = arith.sitofp %13 : vector<8x12xi32> to vector<8x12xf32>
    %15 = arith.addf %9, %14 : vector<8x12xf32>
    %16 = vector.extract_strided_slice %7 {offsets = [0, 1], sizes = [8, 1], strides = [1, 1]} : vector<8x3xi32> to vector<8x1xi32>
    %17 = vector.broadcast %16 : vector<8x1xi32> to vector<8x12xi32>
    %18 = arith.cmpi eq, %17, %8 : vector<8x12xi32>
    %19 = arith.extui %18 : vector<8x12xi1> to vector<8x12xi32>
    %20 = arith.sitofp %19 : vector<8x12xi32> to vector<8x12xf32>
    %21 = arith.addf %15, %20 : vector<8x12xf32>
    %22 = vector.extract_strided_slice %7 {offsets = [0, 2], sizes = [8, 1], strides = [1, 1]} : vector<8x3xi32> to vector<8x1xi32>
    %23 = vector.broadcast %22 : vector<8x1xi32> to vector<8x12xi32>
    %24 = arith.cmpi eq, %23, %8 : vector<8x12xi32>
    %25 = arith.extui %24 : vector<8x12xi1> to vector<8x12xi32>
    %26 = arith.sitofp %25 : vector<8x12xi32> to vector<8x12xf32>
    %27 = arith.addf %21, %26 : vector<8x12xf32>
    %cst_10 = arith.constant dense<0.000000e+00> : vector<8x2xf32>
    %28 = tpu.matmul %27, %6, %cst_10 {dimension_numbers = #tpu.dot_dimension_numbers<[1], [0], [0], [1], [0, 0, 1, 1], [], []>} : vector<8x12xf32>, vector<12x2xf32>, vector<8x2xf32> -> vector<8x2xf32>
    %29 = arith.addf %5, %28 : vector<8x2xf32>
    %cst_11 = arith.constant -5.000000e+01 : f32
    %cst_12 = arith.constant 5.000000e+01 : f32
    %30 = vector.broadcast %cst_11 : f32 to vector<8x2xf32>
    %31 = arith.maximumf %30, %29 : vector<8x2xf32>
    %32 = vector.broadcast %cst_12 : f32 to vector<8x2xf32>
    %33 = arith.minimumf %32, %31 : vector<8x2xf32>
    %34 = arith.negf %33 : vector<8x2xf32>
    %35 = math.exp %34 : vector<8x2xf32>
    %cst_13 = arith.constant 1.000000e+00 : f32
    %36 = vector.broadcast %cst_13 : f32 to vector<8x2xf32>
    %37 = arith.addf %36, %35 : vector<8x2xf32>
    %38 = arith.divf %36, %37 : vector<8x2xf32>
    %c0_14 = arith.constant 0 : index
    %c0_15 = arith.constant 0 : index
    %39 = vector.load %arg6[%c0_14, %c0_15] : memref<8x2xf32, #tpu.memory_space<vmem>>, vector<8x2xf32>
    tpu.vector_store %arg6[%c0_14, %c0_15], %38 {strides = array<i32>} : memref<8x2xf32, #tpu.memory_space<vmem>>, vector<8x2xf32>,
    return
  }
  func.func @transform_0(%arg0: i32) -> (i32, i32) {
    %c0_i32 = arith.constant 0 : i32
    %c0_i32_0 = arith.constant 0 : i32
    return %arg0, %c0_i32 : i32, i32
  }
  func.func @transform_1(%arg0: i32) -> (i32, i32) {
    %c0_i32 = arith.constant 0 : i32
    %c0_i32_0 = arith.constant 0 : i32
    return %arg0, %c0_i32 : i32, i32
  }
  func.func @transform_2(%arg0: i32) -> (i32, i32) {
    %c0_i32 = arith.constant 0 : i32
    %c0_i32_0 = arith.constant 0 : i32
    %c0_i32_1 = arith.constant 0 : i32
    return %c0_i32, %c0_i32_0 : i32, i32
  }
  func.func @transform_3(%arg0: i32) -> (i32, i32) {
    %c0_i32 = arith.constant 0 : i32
    %c0_i32_0 = arith.constant 0 : i32
    %c0_i32_1 = arith.constant 0 : i32
    return %c0_i32, %c0_i32_0 : i32, i32
  }
  func.func @transform_4(%arg0: i32) -> (i32, i32) {
    %c0_i32 = arith.constant 0 : i32
    %c0_i32_0 = arith.constant 0 : i32
    %c0_i32_1 = arith.constant 0 : i32
    return %c0_i32, %c0_i32_0 : i32, i32
  }
  func.func @transform_5(%arg0: i32) -> (i32, i32) {
    %c0_i32 = arith.constant 0 : i32
    %c0_i32_0 = arith.constant 0 : i32
    return %arg0, %c0_i32 : i32, i32
  }
}

</mosaic_0001>

<llo_original>
// kernel: tpu_custom_call.1
$region0: #{tpu_custom_call.1}
  #allocation0 [shape = 'u32[]', space=smem, size = 0x4, offset = 0x4, fixed_abs, tag = 'smem constant byte address 0x4 - core index']
  #allocation1 [shape = 'u32[72,128]{1,0:T(1,128)}', space=vmem, size = 0x9000, scoped, tag = 'internal scratch']
  %s0 = inlined_call_operand.vmem [shape: f32[8,16], index: 0, kind: input, shape index: {}]
  %s1 = inlined_call_operand.vmem [shape: s32[8,3], index: 1, kind: input, shape index: {}]
  %s2 = inlined_call_operand.vmem [shape: f32[16,2], index: 2, kind: input, shape index: {}]
  %s3 = inlined_call_operand.vmem [shape: f32[1,2], index: 3, kind: input, shape index: {}]
  %s4 = inlined_call_operand.vmem [shape: f32[12,2], index: 4, kind: input, shape index: {}]
  %s5 = inlined_call_operand.vmem [shape: f32[8,2], index: 5, kind: output, shape index: {}]
  %s6 = sld [smem:[#allocation0]]
  $region30: #{tpu_custom_call.1} parent=0
    _
  %s8 = ssub.s32 1, %s6
  %s9 = scalar_select 0, %s8, %s6
  // Predicated region
  $region2: #{tpu_custom_call.1} parent=0 // pred_check
    _
  $region3: #{tpu_custom_call.1} parent=0 // pred_check_branch
    %11 = sbr.rel (0) target = $region5
  $region4: #{tpu_custom_call.1} parent=0 // pred_region
    _
  $region5: #{tpu_custom_call.1} parent=0 // pred_fallthru
    _
  // Predicated region
  $region6: #{tpu_custom_call.1} parent=0 // pred_check
    _
  $region7: #{tpu_custom_call.1} parent=0 // pred_check_branch
    %13 = sbr.rel (0) target = $region9
  $region8: #{tpu_custom_call.1} parent=0 // pred_region
    _
  $region9: #{tpu_custom_call.1} parent=0 // pred_fallthru
    _
  // Predicated region
  $region10: #{tpu_custom_call.1} parent=0 // pred_check
    _
  $region11: #{tpu_custom_call.1} parent=0 // pred_check_branch
    %15 = sbr.rel (0) target = $region13
  $region12: #{tpu_custom_call.1} parent=0 // pred_region
    _
  $region13: #{tpu_custom_call.1} parent=0 // pred_fallthru
    _
  // Predicated region
  $region14: #{tpu_custom_call.1} parent=0 // pred_check
    _
  $region15: #{tpu_custom_call.1} parent=0 // pred_check_branch
    %17 = sbr.rel (0) target = $region17
  $region16: #{tpu_custom_call.1} parent=0 // pred_region
    _
  $region17: #{tpu_custom_call.1} parent=0 // pred_fallthru
    _
  // Predicated region
  $region18: #{tpu_custom_call.1} parent=0 // pred_check
    _
  $region19: #{tpu_custom_call.1} parent=0 // pred_check_branch
    %19 = sbr.rel (0) target = $region21
  $region20: #{tpu_custom_call.1} parent=0 // pred_region
    _
  $region21: #{tpu_custom_call.1} parent=0 // pred_fallthru
    _
  %v20 = vld [vmem:[%s3] sm:$0x1]
  %v21 = vld [vmem:[%s0] sm:$0xff]
  %v22 = vld [vmem:[%s2] sm:$0xff]
  %v23 = vld [vmem:[%s2 + $0x8] sm:$0xff]
  %vm24 = vcmask 130048
  %v26 = vsel %vm24, %v21, 0
  %28 = vmatpush.msra.mxu0 0.0
  %29 = vmatpush.msra.mxu0 0.0
  %30 = vmatpush.msra.mxu0 0.0
  %31 = vmatpush.msra.mxu0 0.0
  %32 = vmatpush.msra.mxu0 0.0
  %33 = vmatpush.msra.mxu0 0.0
  %34 = vmatpush.msra.mxu0 0.0
  %35 = vmatpush.msra.mxu0 0.0
  %36 = vmatpush.msra.mxu0 0.0
  %37 = vmatpush.msra.mxu0 0.0
  %38 = vmatpush.msra.mxu0 0.0
  %39 = vmatpush.msra.mxu0 0.0
  %40 = vmatpush.msra.mxu0 0.0
  %41 = vmatpush.msra.mxu0 0.0
  %42 = vmatpush.msra.mxu0 %v23
  %43 = vmatpush.msra.mxu0 %v22
  %44 = vmatmul.f32.gmra.mxu0 %v26
  %v45 = vpop.f32.mrf.mxu0
  %v46 = vadd.f32 0.0, %v45
  %47 = vdwg.mxu0
  %v49 = vperm.slane %v20, 0
  %v51 = vadd.f32 %v49, %v46
  %v52 = vld [vmem:[%s4] sm:$0xff]
  %v53 = vld [vmem:[%s4 + $0x8] sm:$0xf]
  %v54 = vld [vmem:[%s1] sm:$0xff]
  %v55 = vlaneseq
  %v56 = vand.u32 %v55, 127
  %57 = vset.pattern.permute.xlu0 0
  %58 = vperm.xlu0 %57, %v54
  %v59 = vpop.permute.xlu0 %58
  %vm60 = vcmp.eq.s32.totalorder %v59, %v56
  %v61 = vsel %vm60, 1, 0
  %v62 = vcvt.s32.f32 %v61
  %v63 = vadd.f32 %v62, 0.0
  %64 = vset.pattern.permute.xlu0 1
  %65 = vperm.xlu0 %64, %v54
  %v66 = vpop.permute.xlu0 %65
  %vm67 = vcmp.eq.s32.totalorder %v66, %v56
  %v68 = vsel %vm67, 1, 0
  %v69 = vcvt.s32.f32 %v68
  %v70 = vadd.f32 %v63, %v69
  %71 = vset.pattern.permute.xlu0 2
  %72 = vperm.xlu0 %71, %v54
  %v73 = vpop.permute.xlu0 %72
  %vm74 = vcmp.eq.s32.totalorder %v73, %v56
  %v75 = vsel %vm74, 1, 0
  %v76 = vcvt.s32.f32 %v75
  %v77 = vadd.f32 %v70, %v76
  %vm78 = vcmask 97280
  %v80 = vsel %vm78, %v77, 0
  %vm82 = vcmask 1043456
  %v84 = vsel %vm82, %v53, 0
  %86 = vmatpush.msra.mxu0 0.0
  %87 = vmatpush.msra.mxu0 0.0
  %88 = vmatpush.msra.mxu0 0.0
  %89 = vmatpush.msra.mxu0 0.0
  %90 = vmatpush.msra.mxu0 0.0
  %91 = vmatpush.msra.mxu0 0.0
  %92 = vmatpush.msra.mxu0 0.0
  %93 = vmatpush.msra.mxu0 0.0
  %94 = vmatpush.msra.mxu0 0.0
  %95 = vmatpush.msra.mxu0 0.0
  %96 = vmatpush.msra.mxu0 0.0
  %97 = vmatpush.msra.mxu0 0.0
  %98 = vmatpush.msra.mxu0 0.0
  %99 = vmatpush.msra.mxu0 0.0
  %100 = vmatpush.msra.mxu0 %v84
  %101 = vmatpush.msra.mxu0 %v52
  %102 = vmatmul.f32.gmra.mxu0 %v80
  %v103 = vpop.f32.mrf.mxu0
  %v104 = vadd.f32 0.0, %v103
  %105 = vdwg.mxu0
  %v106 = vadd.f32 %v51, %v104
  %v107 = vmax.f32 %v106, -50.0
  %v108 = vmin.f32 %v107, 50.0
  %v109 = vxor.u32 %v108, 2147483648
  %v110 = vmul.f32 %v109, 1.442695
  %v111 = vpow.pop %v110
  %v112 = vadd.f32 %v111, 1.0
  %v113 = vrcp.pop %v112
  %v114 = vmul.f32 %v112, %v113
  %v115 = vsub.f32 1.0, %v114
  %v116 = vmul.f32 %v113, %v115
  %v117 = vadd.f32 %v113, %v116
  %vm118 = vweird.f32 %v112
  %vm119 = vweird.f32 %v113
  %vm120 = vmor %vm118, %vm119
  %v121 = vsel %vm120, %v113, %v117
  %v122 = vand.u32 2147483647, %v112
  %vm123 = vcmp.eq.f32.partialorder %v122, 8.507059e+37
  %v124 = vand.u32 %v112, 2147483648
  %v125 = vor.u32 1.1754944e-38, %v124
  %v126 = vsel %vm123, %v125, %v121
  %v127 = vmul.f32 1.0, %v126
  %vm128 = vcmask 15360
  %129 = vst.msk [vmem:[%s5] sm:$0xff] %vm128, %v127
  // Predicated region
  $region22: #{tpu_custom_call.1} parent=0 // pred_check
    _
  $region23: #{tpu_custom_call.1} parent=0 // pred_check_branch
    %131 = sbr.rel (0) target = $region25
  $region24: #{tpu_custom_call.1} parent=0 // pred_region
    _
  $region25: #{tpu_custom_call.1} parent=0 // pred_fallthru
    _
  // Predicated region
  $region26: #{tpu_custom_call.1} parent=0 // pred_check
    _
  $region27: #{tpu_custom_call.1} parent=0 // pred_check_branch
    %133 = sbr.rel (0) target = $region29
  $region28: #{tpu_custom_call.1} parent=0 // pred_region
    _
  $region29: #{tpu_custom_call.1} parent=0 // pred_fallthru
    _

</llo_original>
